<compile_context>
chip_gen: v5e
topology: v5e:2x2
jax: 0.10.0
libtpu: 0.0.40
codegen_flags: <defaults>
</compile_context>

<pallas_src>
import jax
import jax.numpy as jnp
from jax.experimental import pallas as pl
from jax.experimental.pallas import tpu as pltpu

HIDDEN = 32       # hidden width of both MLPs
N_POINTS = 128    # number of path samples (lane dimension)

# Static row offsets inside the packed weight slab (all 8-aligned).
_PH = 0                 # path-MLP hidden block rows  [0, 32)
_PO = HIDDEN            # path-MLP output block rows  [32, 35)
_SH = 40                # sns-MLP  hidden block rows  [40, 72)
_SO = 72                # sns-MLP  output block rows  [72, 75)
_WROWS = 80
_WCOLS = 40


def surface_path_map_kernel(xin_ref, w_ref, out_ref):
    H = HIDDEN
    # Packed, transposed inputs: row 0 = p, rows 1:4 = start^T, rows 4:7 = end^T.
    p = xin_ref[0:1, :]        # (1, N)
    start = xin_ref[1:4, :]    # (3, N)
    end = xin_ref[4:7, :]      # (3, N)

    # ---------------- sphere_path_map: 1 -> H -> H -> 3 (transposed) ----------
    pw2 = w_ref[_PH:_PH + H, 0:H]             # (H, H)  W2^T
    pw1 = w_ref[_PH:_PH + H, H:H + 1]         # (H, 1)  W1^T (K=1)
    pb1 = w_ref[_PH:_PH + H, H + 1:H + 2]     # (H, 1)
    pb2 = w_ref[_PH:_PH + H, H + 2:H + 3]     # (H, 1)
    pw3 = w_ref[_PO:_PO + 3, 0:H]             # (3, H)  W3^T
    pb3 = w_ref[_PO:_PO + 3, H:H + 1]         # (3, 1)

    # First layer (K=1): pure VPU broadcast FMA, no MXU.
    h = jnp.maximum(pw1 * p + pb1, 0.0)                                        # (H, N)
    h = jnp.maximum(jnp.dot(pw2, h, preferred_element_type=jnp.float32) + pb2, 0.0)
    path_out = jnp.dot(pw3, h, preferred_element_type=jnp.float32) + pb3       # (3, N)

    # displacements + linear part
    q = 1.0 - p
    x = p * q * path_out + p * end + q * start                                 # (3, N)

    # L2 normalize over the 3 feature rows: explicit 3-term sum-of-squares +
    # EUP rsqrt.  max(ss, eps^2) with eps=1e-12 matches F.normalize's clamp.
    x0 = x[0:1, :]
    x1 = x[1:2, :]
    x2 = x[2:3, :]
    inv = jax.lax.rsqrt(jnp.maximum(x0 * x0 + x1 * x1 + x2 * x2, 1e-24))       # (1, N)
    mapped = x * inv                                                           # (3, N)

    # ---------------- sns: 3 -> H -> H -> 3 (transposed) ----------------------
    sw2 = w_ref[_SH:_SH + H, 0:H]             # (H, H)  W2^T
    sw1c0 = w_ref[_SH:_SH + H, H:H + 1]       # (H, 1)  W1^T[:, 0]
    sw1c1 = w_ref[_SH:_SH + H, H + 1:H + 2]   # (H, 1)  W1^T[:, 1]
    sw1c2 = w_ref[_SH:_SH + H, H + 2:H + 3]   # (H, 1)  W1^T[:, 2]
    sb1 = w_ref[_SH:_SH + H, H + 3:H + 4]     # (H, 1)
    sb2 = w_ref[_SH:_SH + H, H + 4:H + 5]     # (H, 1)
    sw3 = w_ref[_SO:_SO + 3, 0:H]             # (3, H)  W3^T
    sb3 = w_ref[_SO:_SO + 3, H:H + 1]         # (3, 1)

    m0 = x0 * inv
    m1 = x1 * inv
    m2 = x2 * inv
    # First layer (K=3): three VPU broadcast FMAs.
    g = jnp.maximum(sw1c0 * m0 + sw1c1 * m1 + sw1c2 * m2 + sb1, 0.0)           # (H, N)
    g = jnp.maximum(jnp.dot(sw2, g, preferred_element_type=jnp.float32) + sb2, 0.0)
    points3d = jnp.dot(sw3, g, preferred_element_type=jnp.float32) + sb3       # (3, N)

    # Single lane-dense (6, N) output slab: rows 0:3 = points3D^T, 3:6 = mapped^T.
    out_ref[0:3, :] = points3d
    out_ref[3:6, :] = mapped


def make_params(key, d_in, d_hidden, d_out):
    ks = jax.random.split(key, 6)
    w1 = jax.random.normal(ks[0], (d_in, d_hidden), jnp.float32) / jnp.sqrt(d_in)
    b1 = 0.01 * jax.random.normal(ks[1], (1, d_hidden), jnp.float32)
    w2 = jax.random.normal(ks[2], (d_hidden, d_hidden), jnp.float32) / jnp.sqrt(d_hidden)
    b2 = 0.01 * jax.random.normal(ks[3], (1, d_hidden), jnp.float32)
    w3 = jax.random.normal(ks[4], (d_hidden, d_out), jnp.float32) / jnp.sqrt(d_hidden)
    b3 = 0.01 * jax.random.normal(ks[5], (1, d_out), jnp.float32)
    return [w1, b1, w2, b2, w3, b3]


def pack_weights(path_params, sns_params):
    """Pack both MLPs (transposed) into a single (80, 40) f32 slab.

    MXU operands (W2^T, W3^T) sit at lane offset 0; the rank-1/rank-3 first
    layers and biases occupy columns >= HIDDEN.  Row offsets are 8-aligned.
    """
    H = HIDDEN
    pw1, pb1, pw2, pb2, pw3, pb3 = path_params
    sw1, sb1, sw2, sb2, sw3, sb3 = sns_params
    slab = jnp.zeros((_WROWS, _WCOLS), jnp.float32)
    # Path hidden block
    slab = slab.at[_PH:_PH + H, 0:H].set(pw2.T)
    slab = slab.at[_PH:_PH + H, H:H + 1].set(pw1.T)
    slab = slab.at[_PH:_PH + H, H + 1:H + 2].set(pb1.T)
    slab = slab.at[_PH:_PH + H, H + 2:H + 3].set(pb2.T)
    # Path output block
    slab = slab.at[_PO:_PO + 3, 0:H].set(pw3.T)
    slab = slab.at[_PO:_PO + 3, H:H + 1].set(pb3.T)
    # SNS hidden block
    slab = slab.at[_SH:_SH + H, 0:H].set(sw2.T)
    slab = slab.at[_SH:_SH + H, H:H + 3].set(sw1.T)
    slab = slab.at[_SH:_SH + H, H + 3:H + 4].set(sb1.T)
    slab = slab.at[_SH:_SH + H, H + 4:H + 5].set(sb2.T)
    # SNS output block
    slab = slab.at[_SO:_SO + 3, 0:H].set(sw3.T)
    slab = slab.at[_SO:_SO + 3, H:H + 1].set(sb3.T)
    return slab


def surface_path_map(points1D, tgt_start, tgt_end, path_params, sns_params):
    N = points1D.shape[0]

    # Lane-dense (C, N) layout: pack p / start / end into one (7, N) slab.
    xin = jnp.concatenate([points1D.T, tgt_start.T, tgt_end.T], axis=0).astype(jnp.float32)
    wslab = pack_weights(path_params, sns_params)

    out = pl.pallas_call(
        surface_path_map_kernel,
        out_shape=jax.ShapeDtypeStruct((6, N), jnp.float32),
        grid=(1,),
        in_specs=[pl.BlockSpec((7, N), lambda i: (0, 0)),
                  pl.BlockSpec((_WROWS, _WCOLS), lambda i: (0, 0))],
        out_specs=pl.BlockSpec((6, N), lambda i: (0, 0)),
        compiler_params=pltpu.CompilerParams(
            dimension_semantics=("arbitrary",)),
    )(xin, wslab)

    points3D = out[0:3, :].T    # (N, 3)
    mapped = out[3:6, :].T      # (N, 3)
    return points3D, mapped


def reference_forward(points1D, tgt_start, tgt_end, path_params, sns_params):
    """Pure-JAX reference mirroring the PyTorch forward (row-major (N, C))."""
    def mlp(x, params):
        w1, b1, w2, b2, w3, b3 = params
        h = jnp.maximum(x @ w1 + b1, 0.0)
        h = jnp.maximum(h @ w2 + b2, 0.0)
        return h @ w3 + b3

    d = points1D * (1.0 - points1D) * mlp(points1D, path_params)
    lin = points1D * tgt_end + (1.0 - points1D) * tgt_start
    x = d + lin
    norm = jnp.sqrt(jnp.sum(x * x, axis=1, keepdims=True))
    mapped = x / jnp.maximum(norm, 1e-12)
    return mlp(mapped, sns_params), mapped


if __name__ == "__main__":
    key = jax.random.PRNGKey(0)
    k_p, k_s, k_e, k_path, k_sns = jax.random.split(key, 5)

    # points1D in [0, 1]; start/end points on the unit sphere.
    points1D = jax.random.uniform(k_p, (N_POINTS, 1), jnp.float32)
    start = jax.random.normal(k_s, (N_POINTS, 3), jnp.float32)
    start = start / jnp.linalg.norm(start, axis=1, keepdims=True)
    end = jax.random.normal(k_e, (N_POINTS, 3), jnp.float32)
    end = end / jnp.linalg.norm(end, axis=1, keepdims=True)

    path_params = make_params(k_path, 1, HIDDEN, 3)   # sphere_path_map: 1 -> 3
    sns_params = make_params(k_sns, 3, HIDDEN, 3)     # sns: 3 -> 3

    points3D, mapped = surface_path_map(points1D, start, end, path_params, sns_params)
    jax.block_until_ready((points3D, mapped))

    ref3D, ref_mapped = reference_forward(points1D, start, end, path_params, sns_params)
    assert jnp.allclose(points3D, ref3D, atol=1e-3, rtol=1e-3)
    assert jnp.allclose(mapped, ref_mapped, atol=1e-3, rtol=1e-3)

    print("KERNEL_OK")
</pallas_src>

<mosaic_0001>
module attributes {stable_mosaic.version = 11 : i64} {
  func.func @surface_path_map_kernel(%arg0: i32, %arg1: memref<7x128xf32, #tpu.memory_space<vmem>>, %arg2: memref<80x40xf32, #tpu.memory_space<vmem>>, %arg3: memref<6x128xf32, #tpu.memory_space<vmem>>) attributes {dimension_semantics = [#tpu.dimension_semantics<arbitrary>], iteration_bounds = array<i64: 1>, scalar_prefetch = 0 : i64, scratch_operands = 0 : i64, tpu.core_type = #tpu.core_type<tc>, window_params = [{pipeline_mode = #tpu.pipeline_mode<synchronous>, transform_indices = @transform_0, window_bounds = array<i64: 7, 128>}, {pipeline_mode = #tpu.pipeline_mode<synchronous>, transform_indices = @transform_1, window_bounds = array<i64: 80, 40>}, {pipeline_mode = #tpu.pipeline_mode<synchronous>, transform_indices = @transform_2, window_bounds = array<i64: 6, 128>}]} {
    %c0 = arith.constant 0 : index
    %c0_0 = arith.constant 0 : index
    %0 = vector.load %arg1[%c0, %c0_0] : memref<7x128xf32, #tpu.memory_space<vmem>>, vector<1x128xf32>
    %c1 = arith.constant 1 : index
    %c0_1 = arith.constant 0 : index
    %1 = vector.load %arg1[%c1, %c0_1] : memref<7x128xf32, #tpu.memory_space<vmem>>, vector<3x128xf32>
    %c4 = arith.constant 4 : index
    %c0_2 = arith.constant 0 : index
    %2 = vector.load %arg1[%c4, %c0_2] : memref<7x128xf32, #tpu.memory_space<vmem>>, vector<3x128xf32>
    %c0_3 = arith.constant 0 : index
    %c0_4 = arith.constant 0 : index
    %3 = vector.load %arg2[%c0_3, %c0_4] : memref<80x40xf32, #tpu.memory_space<vmem>>, vector<32x32xf32>
    %c0_5 = arith.constant 0 : index
    %c32 = arith.constant 32 : index
    %4 = vector.load %arg2[%c0_5, %c32] : memref<80x40xf32, #tpu.memory_space<vmem>>, vector<32x1xf32>
    %c0_6 = arith.constant 0 : index
    %c33 = arith.constant 33 : index
    %5 = vector.load %arg2[%c0_6, %c33] : memref<80x40xf32, #tpu.memory_space<vmem>>, vector<32x1xf32>
    %c0_7 = arith.constant 0 : index
    %c34 = arith.constant 34 : index
    %6 = vector.load %arg2[%c0_7, %c34] : memref<80x40xf32, #tpu.memory_space<vmem>>, vector<32x1xf32>
    %c32_8 = arith.constant 32 : index
    %c0_9 = arith.constant 0 : index
    %7 = vector.load %arg2[%c32_8, %c0_9] : memref<80x40xf32, #tpu.memory_space<vmem>>, vector<3x32xf32>
    %c32_10 = arith.constant 32 : index
    %c32_11 = arith.constant 32 : index
    %8 = vector.load %arg2[%c32_10, %c32_11] : memref<80x40xf32, #tpu.memory_space<vmem>>, vector<3x1xf32>
    %9 = vector.broadcast %4 : vector<32x1xf32> to vector<32x128xf32>
    %10 = vector.broadcast %0 : vector<1x128xf32> to vector<32x128xf32>
    %11 = arith.mulf %9, %10 : vector<32x128xf32>
    %12 = vector.broadcast %5 : vector<32x1xf32> to vector<32x128xf32>
    %13 = arith.addf %11, %12 : vector<32x128xf32>
    %cst = arith.constant 0.000000e+00 : f32
    %14 = vector.broadcast %cst : f32 to vector<32x128xf32>
    %15 = arith.maximumf %13, %14 : vector<32x128xf32>
    %cst_12 = arith.constant dense<0.000000e+00> : vector<32x128xf32>
    %16 = tpu.matmul %3, %15, %cst_12 {dimension_numbers = #tpu.dot_dimension_numbers<[1], [0], [0], [1], [0, 0, 1, 1], [], []>} : vector<32x32xf32>, vector<32x128xf32>, vector<32x128xf32> -> vector<32x128xf32>
    %17 = vector.broadcast %6 : vector<32x1xf32> to vector<32x128xf32>
    %18 = arith.addf %16, %17 : vector<32x128xf32>
    %cst_13 = arith.constant 0.000000e+00 : f32
    %19 = vector.broadcast %cst_13 : f32 to vector<32x128xf32>
    %20 = arith.maximumf %18, %19 : vector<32x128xf32>
    %cst_14 = arith.constant dense<0.000000e+00> : vector<3x128xf32>
    %21 = tpu.matmul %7, %20, %cst_14 {dimension_numbers = #tpu.dot_dimension_numbers<[1], [0], [0], [1], [0, 0, 1, 1], [], []>} : vector<3x32xf32>, vector<32x128xf32>, vector<3x128xf32> -> vector<3x128xf32>
    %22 = vector.broadcast %8 : vector<3x1xf32> to vector<3x128xf32>
    %23 = arith.addf %21, %22 : vector<3x128xf32>
    %cst_15 = arith.constant 1.000000e+00 : f32
    %24 = vector.broadcast %cst_15 : f32 to vector<1x128xf32>
    %25 = arith.subf %24, %0 : vector<1x128xf32>
    %26 = arith.mulf %0, %25 : vector<1x128xf32>
    %27 = vector.broadcast %26 : vector<1x128xf32> to vector<3x128xf32>
    %28 = arith.mulf %27, %23 : vector<3x128xf32>
    %29 = vector.broadcast %0 : vector<1x128xf32> to vector<3x128xf32>
    %30 = arith.mulf %29, %2 : vector<3x128xf32>
    %31 = arith.addf %28, %30 : vector<3x128xf32>
    %32 = vector.broadcast %25 : vector<1x128xf32> to vector<3x128xf32>
    %33 = arith.mulf %32, %1 : vector<3x128xf32>
    %34 = arith.addf %31, %33 : vector<3x128xf32>
    %35 = vector.extract_strided_slice %34 {offsets = [0, 0], sizes = [1, 128], strides = [1, 1]} : vector<3x128xf32> to vector<1x128xf32>
    %36 = vector.extract_strided_slice %34 {offsets = [1, 0], sizes = [1, 128], strides = [1, 1]} : vector<3x128xf32> to vector<1x128xf32>
    %37 = vector.extract_strided_slice %34 {offsets = [2, 0], sizes = [1, 128], strides = [1, 1]} : vector<3x128xf32> to vector<1x128xf32>
    %38 = arith.mulf %35, %35 : vector<1x128xf32>
    %39 = arith.mulf %36, %36 : vector<1x128xf32>
    %40 = arith.addf %38, %39 : vector<1x128xf32>
    %41 = arith.mulf %37, %37 : vector<1x128xf32>
    %42 = arith.addf %40, %41 : vector<1x128xf32>
    %cst_16 = arith.constant 1.000000e-24 : f32
    %43 = vector.broadcast %cst_16 : f32 to vector<1x128xf32>
    %44 = arith.maximumf %42, %43 : vector<1x128xf32>
    %45 = math.rsqrt %44 : vector<1x128xf32>
    %46 = vector.broadcast %45 : vector<1x128xf32> to vector<3x128xf32>
    %47 = arith.mulf %34, %46 : vector<3x128xf32>
    %c40 = arith.constant 40 : index
    %c0_17 = arith.constant 0 : index
    %48 = vector.load %arg2[%c40, %c0_17] : memref<80x40xf32, #tpu.memory_space<vmem>>, vector<32x32xf32>
    %c40_18 = arith.constant 40 : index
    %c32_19 = arith.constant 32 : index
    %49 = vector.load %arg2[%c40_18, %c32_19] : memref<80x40xf32, #tpu.memory_space<vmem>>, vector<32x1xf32>
    %c40_20 = arith.constant 40 : index
    %c33_21 = arith.constant 33 : index
    %50 = vector.load %arg2[%c40_20, %c33_21] : memref<80x40xf32, #tpu.memory_space<vmem>>, vector<32x1xf32>
    %c40_22 = arith.constant 40 : index
    %c34_23 = arith.constant 34 : index
    %51 = vector.load %arg2[%c40_22, %c34_23] : memref<80x40xf32, #tpu.memory_space<vmem>>, vector<32x1xf32>
    %c40_24 = arith.constant 40 : index
    %c35 = arith.constant 35 : index
    %52 = vector.load %arg2[%c40_24, %c35] : memref<80x40xf32, #tpu.memory_space<vmem>>, vector<32x1xf32>
    %c40_25 = arith.constant 40 : index
    %c36 = arith.constant 36 : index
    %53 = vector.load %arg2[%c40_25, %c36] : memref<80x40xf32, #tpu.memory_space<vmem>>, vector<32x1xf32>
    %c72 = arith.constant 72 : index
    %c0_26 = arith.constant 0 : index
    %54 = vector.load %arg2[%c72, %c0_26] : memref<80x40xf32, #tpu.memory_space<vmem>>, vector<3x32xf32>
    %c72_27 = arith.constant 72 : index
    %c32_28 = arith.constant 32 : index
    %55 = vector.load %arg2[%c72_27, %c32_28] : memref<80x40xf32, #tpu.memory_space<vmem>>, vector<3x1xf32>
    %56 = arith.mulf %35, %45 : vector<1x128xf32>
    %57 = arith.mulf %36, %45 : vector<1x128xf32>
    %58 = arith.mulf %37, %45 : vector<1x128xf32>
    %59 = vector.broadcast %49 : vector<32x1xf32> to vector<32x128xf32>
    %60 = vector.broadcast %56 : vector<1x128xf32> to vector<32x128xf32>
    %61 = arith.mulf %59, %60 : vector<32x128xf32>
    %62 = vector.broadcast %50 : vector<32x1xf32> to vector<32x128xf32>
    %63 = vector.broadcast %57 : vector<1x128xf32> to vector<32x128xf32>
    %64 = arith.mulf %62, %63 : vector<32x128xf32>
    %65 = arith.addf %61, %64 : vector<32x128xf32>
    %66 = vector.broadcast %51 : vector<32x1xf32> to vector<32x128xf32>
    %67 = vector.broadcast %58 : vector<1x128xf32> to vector<32x128xf32>
    %68 = arith.mulf %66, %67 : vector<32x128xf32>
    %69 = arith.addf %65, %68 : vector<32x128xf32>
    %70 = vector.broadcast %52 : vector<32x1xf32> to vector<32x128xf32>
    %71 = arith.addf %69, %70 : vector<32x128xf32>
    %cst_29 = arith.constant 0.000000e+00 : f32
    %72 = vector.broadcast %cst_29 : f32 to vector<32x128xf32>
    %73 = arith.maximumf %71, %72 : vector<32x128xf32>
    %cst_30 = arith.constant dense<0.000000e+00> : vector<32x128xf32>
    %74 = tpu.matmul %48, %73, %cst_30 {dimension_numbers = #tpu.dot_dimension_numbers<[1], [0], [0], [1], [0, 0, 1, 1], [], []>} : vector<32x32xf32>, vector<32x128xf32>, vector<32x128xf32> -> vector<32x128xf32>
    %75 = vector.broadcast %53 : vector<32x1xf32> to vector<32x128xf32>
    %76 = arith.addf %74, %75 : vector<32x128xf32>
    %cst_31 = arith.constant 0.000000e+00 : f32
    %77 = vector.broadcast %cst_31 : f32 to vector<32x128xf32>
    %78 = arith.maximumf %76, %77 : vector<32x128xf32>
    %cst_32 = arith.constant dense<0.000000e+00> : vector<3x128xf32>
    %79 = tpu.matmul %54, %78, %cst_32 {dimension_numbers = #tpu.dot_dimension_numbers<[1], [0], [0], [1], [0, 0, 1, 1], [], []>} : vector<3x32xf32>, vector<32x128xf32>, vector<3x128xf32> -> vector<3x128xf32>
    %80 = vector.broadcast %55 : vector<3x1xf32> to vector<3x128xf32>
    %81 = arith.addf %79, %80 : vector<3x128xf32>
    %c0_33 = arith.constant 0 : index
    %c0_34 = arith.constant 0 : index
    %82 = vector.load %arg3[%c0_33, %c0_34] : memref<6x128xf32, #tpu.memory_space<vmem>>, vector<3x128xf32>
    tpu.vector_store %arg3[%c0_33, %c0_34], %81 {strides = array<i32>} : memref<6x128xf32, #tpu.memory_space<vmem>>, vector<3x128xf32>,
    %c3 = arith.constant 3 : index
    %c0_35 = arith.constant 0 : index
    %83 = vector.load %arg3[%c3, %c0_35] : memref<6x128xf32, #tpu.memory_space<vmem>>, vector<3x128xf32>
    tpu.vector_store %arg3[%c3, %c0_35], %47 {strides = array<i32>} : memref<6x128xf32, #tpu.memory_space<vmem>>, vector<3x128xf32>,
    return
  }
  func.func @transform_0(%arg0: i32) -> (i32, i32) {
    %c0_i32 = arith.constant 0 : i32
    %c0_i32_0 = arith.constant 0 : i32
    %c0_i32_1 = arith.constant 0 : i32
    return %c0_i32, %c0_i32_0 : i32, i32
  }
  func.func @transform_1(%arg0: i32) -> (i32, i32) {
    %c0_i32 = arith.constant 0 : i32
    %c0_i32_0 = arith.constant 0 : i32
    %c0_i32_1 = arith.constant 0 : i32
    return %c0_i32, %c0_i32_0 : i32, i32
  }
  func.func @transform_2(%arg0: i32) -> (i32, i32) {
    %c0_i32 = arith.constant 0 : i32
    %c0_i32_0 = arith.constant 0 : i32
    %c0_i32_1 = arith.constant 0 : i32
    return %c0_i32, %c0_i32_0 : i32, i32
  }
}

</mosaic_0001>

<llo_original>
// kernel: tpu_custom_call.1
$region0: #{tpu_custom_call.1}
  #allocation0 [shape = 'u32[]', space=smem, size = 0x4, offset = 0x4, fixed_abs, tag = 'smem constant byte address 0x4 - core index']
  #allocation1 [shape = 'u32[72,128]{1,0:T(1,128)}', space=vmem, size = 0x9000, scoped, tag = 'internal scratch']
  %s0 = inlined_call_operand.vmem [shape: f32[7,128], index: 0, kind: input, shape index: {}]
  %s1 = inlined_call_operand.vmem [shape: f32[80,40], index: 1, kind: input, shape index: {}]
  %s2 = inlined_call_operand.hbm [shape: f32[6,128], index: 2, kind: output, shape index: {}]
  %s3 = sld [smem:[#allocation0]]
  $region18: #{tpu_custom_call.1} parent=0
    _
  %s5 = ssub.s32 1, %s3
  %s6 = scalar_select 0, %s5, %s3
  $region1: #{tpu_custom_call.1} parent=0
    #allocation2 [shape = 'u8[4096]{0}', space=vmem, size = 0x1000, scoped, tag = 'output window, operand 0, single buffered']
    #allocation3 [shape = 's32[1]{0}', space=sflag, size = 0x4, scoped, tag = 'scoped memory for tpu_custom_call.1']
    %7 = vsyncpa [#allocation3], 0
    // Predicated region
    $region2: #{tpu_custom_call.1} parent=1 // pred_check
      _
    $region3: #{tpu_custom_call.1} parent=1 // pred_check_branch
      %9 = sbr.rel (0) target = $region5
    $region4: #{tpu_custom_call.1} parent=1 // pred_region
      _
    $region5: #{tpu_custom_call.1} parent=1 // pred_fallthru
      _
    // Predicated region
    $region6: #{tpu_custom_call.1} parent=1 // pred_check
      _
    $region7: #{tpu_custom_call.1} parent=1 // pred_check_branch
      %11 = sbr.rel (0) target = $region9
    $region8: #{tpu_custom_call.1} parent=1 // pred_region
      _
    $region9: #{tpu_custom_call.1} parent=1 // pred_fallthru
      _
    %v12 = vld [vmem:[%s0] sm:$0x1]
    %v13 = vld [vmem:[%s0 + $0x1] sm:$0x7]
    %v14 = vld [vmem:[%s0 + $0x4] sm:$0x7]
    %v15 = vld [vmem:[%s1] sm:$0xff]
    %v16 = vld [vmem:[%s1 + $0x8] sm:$0xff]
    %v17 = vld [vmem:[%s1 + $0x10] sm:$0xff]
    %v18 = vld [vmem:[%s1 + $0x18] sm:$0xff]
    %v19 = vld [vmem:[%s1 + $0x20] sm:$0x7]
    %21 = vset.pattern.permute.xlu0 32
    %22 = vperm.xlu0 %21, %v15
    %v23 = vpop.permute.xlu0 %22
    %26 = vset.pattern.permute.xlu0 32
    %27 = vperm.xlu0 %26, %v16
    %v28 = vpop.permute.xlu0 %27
    %31 = vset.pattern.permute.xlu0 32
    %32 = vperm.xlu0 %31, %v17
    %v33 = vpop.permute.xlu0 %32
    %36 = vset.pattern.permute.xlu0 32
    %37 = vperm.xlu0 %36, %v18
    %v38 = vpop.permute.xlu0 %37
    %v40 = vperm.slane %v12, 0
    %v41 = vmul.f32 %v23, %v40
    %v42 = vmul.f32 %v28, %v40
    %v43 = vmul.f32 %v33, %v40
    %v44 = vmul.f32 %v38, %v40
    %45 = vset.pattern.permute.xlu0 33
    %46 = vperm.xlu0 %45, %v15
    %v47 = vpop.permute.xlu0 %46
    %49 = vset.pattern.permute.xlu0 33
    %50 = vperm.xlu0 %49, %v16
    %v51 = vpop.permute.xlu0 %50
    %53 = vset.pattern.permute.xlu0 33
    %54 = vperm.xlu0 %53, %v17
    %v55 = vpop.permute.xlu0 %54
    %57 = vset.pattern.permute.xlu0 33
    %58 = vperm.xlu0 %57, %v18
    %v59 = vpop.permute.xlu0 %58
    %v61 = vadd.f32 %v41, %v47
    %v62 = vadd.f32 %v42, %v51
    %v63 = vadd.f32 %v43, %v55
    %v64 = vadd.f32 %v44, %v59
    %v65 = vmax.f32 %v61, 0.0
    %v66 = vmax.f32 %v62, 0.0
    %v67 = vmax.f32 %v63, 0.0
    %v68 = vmax.f32 %v64, 0.0
    %69 = vset.pattern.permute.xlu0 34
    %70 = vperm.xlu0 %69, %v15
    %v71 = vpop.permute.xlu0 %70
    %73 = vset.pattern.permute.xlu0 34
    %74 = vperm.xlu0 %73, %v16
    %v75 = vpop.permute.xlu0 %74
    %77 = vset.pattern.permute.xlu0 34
    %78 = vperm.xlu0 %77, %v17
    %v79 = vpop.permute.xlu0 %78
    %81 = vset.pattern.permute.xlu0 34
    %82 = vperm.xlu0 %81, %v18
    %v83 = vpop.permute.xlu0 %82
    %vm85 = vcmask 261120
    %v86 = vsel %vm85, %v15, 0
    %v88 = vsel %vm85, %v16, 0
    %v90 = vsel %vm85, %v17, 0
    %v92 = vsel %vm85, %v18, 0
    %94 = vmatpush.msra.mxu0 0.0
    %95 = vmatpush.msra.mxu0 0.0
    %96 = vmatpush.msra.mxu0 0.0
    %97 = vmatpush.msra.mxu0 0.0
    %98 = vmatpush.msra.mxu0 0.0
    %99 = vmatpush.msra.mxu0 0.0
    %100 = vmatpush.msra.mxu0 0.0
    %101 = vmatpush.msra.mxu0 0.0
    %102 = vmatpush.msra.mxu0 0.0
    %103 = vmatpush.msra.mxu0 0.0
    %104 = vmatpush.msra.mxu0 0.0
    %105 = vmatpush.msra.mxu0 0.0
    %106 = vmatpush.msra.mxu0 %v68
    %107 = vmatpush.msra.mxu0 %v67
    %108 = vmatpush.msra.mxu0 %v66
    %109 = vmatpush.msra.mxu0 %v65
    %110 = vmatmul.f32.gmra.mxu0 %v86
    %v111 = vpop.f32.mrf.mxu0
    %v112 = vadd.f32 %v71, %v111
    %113 = vmatmul.f32.gmra.mxu0 %v88
    %v114 = vpop.f32.mrf.mxu0
    %v115 = vadd.f32 %v75, %v114
    %116 = vmatmul.f32.gmra.mxu0 %v90
    %v117 = vpop.f32.mrf.mxu0
    %v118 = vadd.f32 %v79, %v117
    %119 = vmatmul.f32.gmra.mxu0 %v92
    %v120 = vpop.f32.mrf.mxu0
    %v121 = vadd.f32 %v83, %v120
    %122 = vdwg.mxu0
    %v123 = vmax.f32 %v112, 0.0
    %v124 = vmax.f32 %v115, 0.0
    %v125 = vmax.f32 %v118, 0.0
    %v126 = vmax.f32 %v121, 0.0
    %128 = vset.pattern.permute.xlu0 32
    %129 = vperm.xlu0 %128, %v19
    %v130 = vpop.permute.xlu0 %129
    %v132 = vsel %vm85, %v19, 0
    %134 = vmatpush.msra.mxu0 0.0
    %135 = vmatpush.msra.mxu0 0.0
    %136 = vmatpush.msra.mxu0 0.0
    %137 = vmatpush.msra.mxu0 0.0
    %138 = vmatpush.msra.mxu0 0.0
    %139 = vmatpush.msra.mxu0 0.0
    %140 = vmatpush.msra.mxu0 0.0
    %141 = vmatpush.msra.mxu0 0.0
    %142 = vmatpush.msra.mxu0 0.0
    %143 = vmatpush.msra.mxu0 0.0
    %144 = vmatpush.msra.mxu0 0.0
    %145 = vmatpush.msra.mxu0 0.0
    %146 = vmatpush.msra.mxu0 %v126
    %147 = vmatpush.msra.mxu0 %v125
    %148 = vmatpush.msra.mxu0 %v124
    %149 = vmatpush.msra.mxu0 %v123
    %150 = vmatmul.f32.gmra.mxu0 %v132
    %v151 = vpop.f32.mrf.mxu0
    %v152 = vadd.f32 %v130, %v151
    %153 = vdwg.mxu0
    %v154 = vsub.f32 1.0, %v12
    %v155 = vmul.f32 %v12, %v154
    %v156 = vperm.slane %v155, 0
    %v157 = vmul.f32 %v156, %v152
    %v158 = vmul.f32 %v40, %v14
    %v159 = vadd.f32 %v157, %v158
    %v160 = vperm.slane %v154, 0
    %v161 = vmul.f32 %v160, %v13
    %v162 = vadd.f32 %v159, %v161
    %v163 = vmul.f32 %v162, %v162
    %v165 = vrot.slane %v163, 1
    %v167 = vadd.f32 %v163, %v165
    %v168 = vrot.slane %v163, 2
    %v170 = vadd.f32 %v167, %v168
    %v171 = vmax.f32 %v170, 1e-24
    %v172 = vrsqrt.pop %v171
    %v173 = vmul.f32 %v172, %v171
    %v174 = vmul.f32 %v173, %v172
    %v175 = vmul.f32 0.5, %v174
    %v176 = vsub.f32 1.5, %v175
    %v177 = vmul.f32 %v172, %v176
    %vm178 = vweird.f32 %v171
    %vm179 = vweird.f32 %v172
    %vm180 = vmor %vm178, %vm179
    %v181 = vsel %vm180, %v172, %v177
    %v182 = vperm.slane %v181, 0
    %v183 = vmul.f32 %v162, %v182
    %v184 = vld [vmem:[%s1 + $0x28] sm:$0xff]
    %v185 = vld [vmem:[%s1 + $0x30] sm:$0xff]
    %v186 = vld [vmem:[%s1 + $0x38] sm:$0xff]
    %v187 = vld [vmem:[%s1 + $0x40] sm:$0xff]
    %v188 = vld [vmem:[%s1 + $0x48] sm:$0x7]
    %v189 = vmul.f32 %v162, %v181
    %v191 = vrot.slane %v181, 7
    %v193 = vmul.f32 %v162, %v191
    %v194 = vrot.slane %v181, 6
    %v196 = vmul.f32 %v162, %v194
    %198 = vset.pattern.permute.xlu0 32
    %199 = vperm.xlu0 %198, %v184
    %v200 = vpop.permute.xlu0 %199
    %203 = vset.pattern.permute.xlu0 32
    %204 = vperm.xlu0 %203, %v185
    %v205 = vpop.permute.xlu0 %204
    %208 = vset.pattern.permute.xlu0 32
    %209 = vperm.xlu0 %208, %v186
    %v210 = vpop.permute.xlu0 %209
    %213 = vset.pattern.permute.xlu0 32
    %214 = vperm.xlu0 %213, %v187
    %v215 = vpop.permute.xlu0 %214
    %v217 = vperm.slane %v189, 0
    %v218 = vmul.f32 %v200, %v217
    %v219 = vmul.f32 %v205, %v217
    %v220 = vmul.f32 %v210, %v217
    %v221 = vmul.f32 %v215, %v217
    %222 = vset.pattern.permute.xlu0 33
    %223 = vperm.xlu0 %222, %v184
    %v224 = vpop.permute.xlu0 %223
    %226 = vset.pattern.permute.xlu0 33
    %227 = vperm.xlu0 %226, %v185
    %v228 = vpop.permute.xlu0 %227
    %230 = vset.pattern.permute.xlu0 33
    %231 = vperm.xlu0 %230, %v186
    %v232 = vpop.permute.xlu0 %231
    %234 = vset.pattern.permute.xlu0 33
    %235 = vperm.xlu0 %234, %v187
    %v236 = vpop.permute.xlu0 %235
    %v238 = vperm.slane %v193, 1
    %v239 = vmul.f32 %v224, %v238
    %v240 = vmul.f32 %v228, %v238
    %v241 = vmul.f32 %v232, %v238
    %v242 = vmul.f32 %v236, %v238
    %v243 = vadd.f32 %v218, %v239
    %v244 = vadd.f32 %v219, %v240
    %v245 = vadd.f32 %v220, %v241
    %v246 = vadd.f32 %v221, %v242
    %247 = vset.pattern.permute.xlu0 34
    %248 = vperm.xlu0 %247, %v184
    %v249 = vpop.permute.xlu0 %248
    %251 = vset.pattern.permute.xlu0 34
    %252 = vperm.xlu0 %251, %v185
    %v253 = vpop.permute.xlu0 %252
    %255 = vset.pattern.permute.xlu0 34
    %256 = vperm.xlu0 %255, %v186
    %v257 = vpop.permute.xlu0 %256
    %259 = vset.pattern.permute.xlu0 34
    %260 = vperm.xlu0 %259, %v187
    %v261 = vpop.permute.xlu0 %260
    %v263 = vperm.slane %v196, 2
    %v264 = vmul.f32 %v249, %v263
    %v265 = vmul.f32 %v253, %v263
    %v266 = vmul.f32 %v257, %v263
    %v267 = vmul.f32 %v261, %v263
    %v268 = vadd.f32 %v243, %v264
    %v269 = vadd.f32 %v244, %v265
    %v270 = vadd.f32 %v245, %v266
    %v271 = vadd.f32 %v246, %v267
    %272 = vset.pattern.permute.xlu0 35
    %273 = vperm.xlu0 %272, %v184
    %v274 = vpop.permute.xlu0 %273
    %276 = vset.pattern.permute.xlu0 35
    %277 = vperm.xlu0 %276, %v185
    %v278 = vpop.permute.xlu0 %277
    %280 = vset.pattern.permute.xlu0 35
    %281 = vperm.xlu0 %280, %v186
    %v282 = vpop.permute.xlu0 %281
    %284 = vset.pattern.permute.xlu0 35
    %285 = vperm.xlu0 %284, %v187
    %v286 = vpop.permute.xlu0 %285
    %v288 = vadd.f32 %v268, %v274
    %v289 = vadd.f32 %v269, %v278
    %v290 = vadd.f32 %v270, %v282
    %v291 = vadd.f32 %v271, %v286
    %v292 = vmax.f32 %v288, 0.0
    %v293 = vmax.f32 %v289, 0.0
    %v294 = vmax.f32 %v290, 0.0
    %v295 = vmax.f32 %v291, 0.0
    %296 = vset.pattern.permute.xlu0 36
    %297 = vperm.xlu0 %296, %v184
    %v298 = vpop.permute.xlu0 %297
    %300 = vset.pattern.permute.xlu0 36
    %301 = vperm.xlu0 %300, %v185
    %v302 = vpop.permute.xlu0 %301
    %304 = vset.pattern.permute.xlu0 36
    %305 = vperm.xlu0 %304, %v186
    %v306 = vpop.permute.xlu0 %305
    %308 = vset.pattern.permute.xlu0 36
    %309 = vperm.xlu0 %308, %v187
    %v310 = vpop.permute.xlu0 %309
    %v312 = vsel %vm85, %v184, 0
    %v314 = vsel %vm85, %v185, 0
    %v316 = vsel %vm85, %v186, 0
    %v318 = vsel %vm85, %v187, 0
    %320 = vmatpush.msra.mxu0 0.0
    %321 = vmatpush.msra.mxu0 0.0
    %322 = vmatpush.msra.mxu0 0.0
    %323 = vmatpush.msra.mxu0 0.0
    %324 = vmatpush.msra.mxu0 0.0
    %325 = vmatpush.msra.mxu0 0.0
    %326 = vmatpush.msra.mxu0 0.0
    %327 = vmatpush.msra.mxu0 0.0
    %328 = vmatpush.msra.mxu0 0.0
    %329 = vmatpush.msra.mxu0 0.0
    %330 = vmatpush.msra.mxu0 0.0
    %331 = vmatpush.msra.mxu0 0.0
    %332 = vmatpush.msra.mxu0 %v295
    %333 = vmatpush.msra.mxu0 %v294
    %334 = vmatpush.msra.mxu0 %v293
    %335 = vmatpush.msra.mxu0 %v292
    %336 = vmatmul.f32.gmra.mxu0 %v312
    %v337 = vpop.f32.mrf.mxu0
    %v338 = vadd.f32 %v298, %v337
    %339 = vmatmul.f32.gmra.mxu0 %v314
    %v340 = vpop.f32.mrf.mxu0
    %v341 = vadd.f32 %v302, %v340
    %342 = vmatmul.f32.gmra.mxu0 %v316
    %v343 = vpop.f32.mrf.mxu0
    %v344 = vadd.f32 %v306, %v343
    %345 = vmatmul.f32.gmra.mxu0 %v318
    %v346 = vpop.f32.mrf.mxu0
    %v347 = vadd.f32 %v310, %v346
    %348 = vdwg.mxu0
    %v349 = vmax.f32 %v338, 0.0
    %v350 = vmax.f32 %v341, 0.0
    %v351 = vmax.f32 %v344, 0.0
    %v352 = vmax.f32 %v347, 0.0
    %354 = vset.pattern.permute.xlu0 32
    %355 = vperm.xlu0 %354, %v188
    %v356 = vpop.permute.xlu0 %355
    %v358 = vsel %vm85, %v188, 0
    %360 = vmatpush.msra.mxu0 0.0
    %361 = vmatpush.msra.mxu0 0.0
    %362 = vmatpush.msra.mxu0 0.0
    %363 = vmatpush.msra.mxu0 0.0
    %364 = vmatpush.msra.mxu0 0.0
    %365 = vmatpush.msra.mxu0 0.0
    %366 = vmatpush.msra.mxu0 0.0
    %367 = vmatpush.msra.mxu0 0.0
    %368 = vmatpush.msra.mxu0 0.0
    %369 = vmatpush.msra.mxu0 0.0
    %370 = vmatpush.msra.mxu0 0.0
    %371 = vmatpush.msra.mxu0 0.0
    %372 = vmatpush.msra.mxu0 %v352
    %373 = vmatpush.msra.mxu0 %v351
    %374 = vmatpush.msra.mxu0 %v350
    %375 = vmatpush.msra.mxu0 %v349
    %376 = vmatmul.f32.gmra.mxu0 %v358
    %v377 = vpop.f32.mrf.mxu0
    %v378 = vadd.f32 %v356, %v377
    %379 = vdwg.mxu0
    %380 = vst [vmem:[#allocation2] sm:$0x7] %v378
    %381 = vst [vmem:[#allocation2 + $0x3] sm:$0x7] %v183
    // Predicated region
    $region10: #{tpu_custom_call.1} parent=1 // pred_check
      _
    $region11: #{tpu_custom_call.1} parent=1 // pred_check_branch
      %383 = sbr.rel (0) target = $region13
    $region12: #{tpu_custom_call.1} parent=1 // pred_region
      %385 = vsyncadd [#allocation3], 0
      %s387 = sshll.u32 [#allocation2], 4
      %s388 = int_to_ptr.vmem [resolvable:$true] %s387
      %s389 = sshll.u32 %s2, 4
      %s390 = int_to_ptr.hbm [resolvable:$true] %s389
      %392 = dma.vmem_to_hbm [thread:$0]  %s388, 128, %s390, [#allocation3]
    $region13: #{tpu_custom_call.1} parent=1 // pred_fallthru
      _
    // Predicated region
    $region14: #{tpu_custom_call.1} parent=1 // pred_check
      _
    $region15: #{tpu_custom_call.1} parent=1 // pred_check_branch
      %394 = sbr.rel (0) target = $region17
    $region16: #{tpu_custom_call.1} parent=1 // pred_region
      %396 = dma.done [#allocation3], 128
    $region17: #{tpu_custom_call.1} parent=1 // pred_fallthru
      _
    %397 = vsyncpa [#allocation3], 1

</llo_original>
